<compile_context>
chip_gen: v7x
topology: tpu7x:2x2x1
jax: 0.10.0
libtpu: 0.0.40
codegen_flags: <defaults>
</compile_context>

<pallas_src>
import jax
import jax.numpy as jnp
from jax.experimental import pallas as pl
from jax.experimental.pallas import tpu as pltpu

LANES = 128               # vreg lane width
MAX_TILE_BYTES = 4 << 20  # ~4 MiB per tile buffer (HBM-roofline-friendly)


def _round_up(n, m):
    return ((n + m - 1) // m) * m


def _sublanes_for(dtype):
    # Dtype-aware sublane granularity: f32 -> 8, bf16/f16 -> 16, int8/fp8 -> 32.
    return {4: 8, 2: 16, 1: 32}[jnp.dtype(dtype).itemsize]


def linear_kernel(w_ref, b_ref, x_ref, o_ref):
    # w_ref, b_ref: (1, 1) f32 scalars in SMEM.
    # x_ref, o_ref: lane-dense (tile_rows, 128) tiles in VMEM.
    w = w_ref[0, 0]
    b = b_ref[0, 0]
    x = x_ref[...].astype(jnp.float32)
    o_ref[...] = (x * w + b).astype(o_ref.dtype)


def linear_forward(x, weight, bias, *, max_tile_rows=None):
    """y = x @ weight^T + bias, matching torch.nn.Linear(1, 1) semantics."""
    B, in_f = x.shape
    out_f = weight.shape[0]
    assert in_f == 1 and out_f == 1, "kernel is specialized to nn.Linear(1, 1)"

    dtype = x.dtype
    itemsize = jnp.dtype(dtype).itemsize
    sublanes = _sublanes_for(dtype)

    n = B  # total scalar elements (in_features == out_features == 1)
    rows_needed = max(pl.cdiv(n, LANES), 1)
    # Pad rows only to the sublane granularity (not to a tile multiple) so the
    # extra padded HBM traffic is bounded by one sublane group.
    rows = _round_up(rows_needed, sublanes)
    padded = rows * LANES

    if max_tile_rows is None:
        max_tile_rows = max(MAX_TILE_BYTES // (LANES * itemsize), sublanes)
    max_tile_rows = _round_up(max_tile_rows, sublanes)
    tile_rows = min(max_tile_rows, rows)
    num_tiles = pl.cdiv(rows, tile_rows)

    # Lane-dense layout; skip the pad op entirely when no padding is needed.
    # TODO(synk): ideally the caller hands us a lane-dense (rows, 128) view so
    # the (B, 1) -> (rows, 128) relayout / pad / final-slice HBM passes vanish.
    if padded == n:
        x2d = x.reshape(rows, LANES)
    else:
        x2d = jnp.pad(x.reshape(-1), (0, padded - n)).reshape(rows, LANES)

    w2d = weight.reshape(1, 1).astype(jnp.float32)
    b2d = bias.reshape(1, 1).astype(jnp.float32)

    smem_spec = pl.BlockSpec(memory_space=pltpu.MemorySpace.SMEM)
    cost = pl.CostEstimate(flops=2 * padded, transcendentals=0,
                           bytes_accessed=2 * padded * itemsize)

    if num_tiles == 1:
        # Small-input fast path: one un-tiled block, no grid / pipeline setup.
        y2d = pl.pallas_call(
            linear_kernel,
            out_shape=jax.ShapeDtypeStruct((rows, LANES), dtype),
            in_specs=[smem_spec, smem_spec,
                      pl.BlockSpec(memory_space=pltpu.MemorySpace.VMEM)],
            out_specs=pl.BlockSpec(memory_space=pltpu.MemorySpace.VMEM),
            cost_estimate=cost,
        )(w2d, b2d, x2d)
    else:
        y2d = pl.pallas_call(
            linear_kernel,
            out_shape=jax.ShapeDtypeStruct((rows, LANES), dtype),
            grid=(num_tiles,),
            in_specs=[
                smem_spec,                                           # weight
                smem_spec,                                           # bias
                pl.BlockSpec((tile_rows, LANES), lambda i: (i, 0)),  # x tile
            ],
            out_specs=pl.BlockSpec((tile_rows, LANES), lambda i: (i, 0)),
            compiler_params=pltpu.CompilerParams(
                # "parallel" lets the grid shard across both v7x TensorCores;
                # harmless on single-TC v5e/v6e.
                dimension_semantics=("parallel",),
                # Explicit limit: v5e's scoped-VMEM default is 16 MiB; our
                # 2 tiled refs x 2 buffers x 4 MiB tiles need headroom.
                vmem_limit_bytes=32 << 20,
            ),
            cost_estimate=cost,
        )(w2d, b2d, x2d)

    # Restore (B, out_features); skip the tail-slice pass when no padding was
    # added.
    if padded == n:
        return y2d.reshape(B, out_f)
    return y2d.reshape(-1)[:n].reshape(B, out_f)


if __name__ == "__main__":
    key = jax.random.PRNGKey(0)
    kx, kw, kb, kx2, kx3 = jax.random.split(key, 5)

    # Deterministic parameter init (shapes from nn.Linear(1, 1)).
    weight = jax.random.uniform(kw, (1, 1), jnp.float32, minval=-1.0, maxval=1.0)
    bias = jax.random.uniform(kb, (1,), jnp.float32, minval=-1.0, maxval=1.0)

    # B=8: single-block fast path, no padding slice needed on return shape.
    x = jax.random.normal(kx, (8, 1), jnp.float32)
    y = jax.block_until_ready(linear_forward(x, weight, bias))
    y_ref = x @ weight.T + bias
    assert y.shape == (8, 1)
    assert jnp.allclose(y, y_ref, atol=1e-5), "mismatch vs reference (B=8)"

    # B=300: exercises the pad + tail-slice path (still a single block).
    x2 = jax.random.normal(kx2, (300, 1), jnp.float32)
    y2 = jax.block_until_ready(linear_forward(x2, weight, bias))
    y2_ref = x2 @ weight.T + bias
    assert y2.shape == (300, 1)
    assert jnp.allclose(y2, y2_ref, atol=1e-5), "mismatch vs reference (B=300)"

    # B=2500 with a forced small tile: exercises the tiled grid path including
    # a partial (masked) last block, while staying at a small test size.
    x3 = jax.random.normal(kx3, (2500, 1), jnp.float32)
    y3 = jax.block_until_ready(linear_forward(x3, weight, bias, max_tile_rows=16))
    y3_ref = x3 @ weight.T + bias
    assert y3.shape == (2500, 1)
    assert jnp.allclose(y3, y3_ref, atol=1e-5), "mismatch vs reference (B=2500)"

    print("KERNEL_OK")
</pallas_src>

<mosaic_0001>
module attributes {stable_mosaic.version = 11 : i64} {
  func.func @linear_kernel(%arg0: memref<1x1xf32, #tpu.memory_space<smem>>, %arg1: memref<1x1xf32, #tpu.memory_space<smem>>, %arg2: memref<8x128xf32, #tpu.memory_space<vmem>>, %arg3: memref<8x128xf32, #tpu.memory_space<vmem>>) attributes {dimension_semantics = [], scalar_prefetch = 0 : i64, scratch_operands = 0 : i64, tpu.core_type = #tpu.core_type<tc>} {
    %c0 = arith.constant 0 : index
    %c0_0 = arith.constant 0 : index
    %0 = memref.load %arg0[%c0, %c0_0] : memref<1x1xf32, #tpu.memory_space<smem>>
    %c0_1 = arith.constant 0 : index
    %c0_2 = arith.constant 0 : index
    %1 = memref.load %arg1[%c0_1, %c0_2] : memref<1x1xf32, #tpu.memory_space<smem>>
    %c0_3 = arith.constant 0 : index
    %c0_4 = arith.constant 0 : index
    %2 = vector.load %arg2[%c0_3, %c0_4] : memref<8x128xf32, #tpu.memory_space<vmem>>, vector<8x128xf32>
    %3 = vector.broadcast %0 : f32 to vector<8x128xf32>
    %4 = arith.mulf %2, %3 : vector<8x128xf32>
    %5 = vector.broadcast %1 : f32 to vector<8x128xf32>
    %6 = arith.addf %4, %5 : vector<8x128xf32>
    %c0_5 = arith.constant 0 : index
    %c0_6 = arith.constant 0 : index
    %7 = vector.load %arg3[%c0_5, %c0_6] : memref<8x128xf32, #tpu.memory_space<vmem>>, vector<8x128xf32>
    tpu.vector_store %arg3[%c0_5, %c0_6], %6 {strides = array<i32>} : memref<8x128xf32, #tpu.memory_space<vmem>>, vector<8x128xf32>,
    return
  }
}

</mosaic_0001>

<llo_original>
// kernel: tpu_custom_call.1
$region0: #{tpu_custom_call.1}
  #allocation0 [shape = 'u32[]', space=smem, size = 0x4, offset = 0x4, fixed_abs, tag = 'smem constant byte address 0x4 - core index']
  #allocation1 [shape = 'u32[144,128]{1,0:T(1,128)}', space=vmem, size = 0x12000, scoped, tag = 'internal scratch']
  #allocation2 [shape = 'f32[1,1]{1,0:T(1,128)S(6)}', space=smem, size = 0x200, scoped, tag = 'scoped memory for tpu_custom_call.1']
  #allocation3 [shape = 'f32[1,1]{1,0:T(1,128)S(6)}', space=smem, size = 0x200, scoped, tag = 'scoped memory for tpu_custom_call.1']
  %s0 = inlined_call_operand.<no memory space> [shape: f32[1,1], index: 0, kind: input, shape index: {}]
  %s1 = inlined_call_operand.<no memory space> [shape: f32[1,1], index: 1, kind: input, shape index: {}]
  %s2 = inlined_call_operand.hbm [shape: f32[8,128], index: 2, kind: input, shape index: {}]
  %s3 = inlined_call_operand.hbm [shape: f32[8,128], index: 3, kind: output, shape index: {}]
  %s4 = sld [smem:[#allocation0]]
  $region26: #{tpu_custom_call.1} parent=0
    _
  %s6 = ssub.s32 1, %s4
  %s7 = scalar_select 0, %s6, %s4
  %8 = sst [smem:[#allocation2]] %s0
  %9 = sst [smem:[#allocation3]] %s1
  $region1: #{tpu_custom_call.1} parent=0
    #allocation4 [shape = 'u8[4096]{0}', space=vmem, size = 0x1000, scoped, tag = 'input window, operand 2, single buffered']
    #allocation5 [shape = 's32[1]{0}', space=sflag, size = 0x4, scoped, tag = 'scoped memory for tpu_custom_call.1']
    #allocation6 [shape = 's32[1]{0}', space=sflag, size = 0x4, scoped, tag = 'scoped memory for tpu_custom_call.1']
    #allocation7 [shape = 'u8[4096]{0}', space=vmem, size = 0x1000, scoped, tag = 'output window, operand 0, single buffered']
    %10 = vsyncpa [#allocation5], 0
    %11 = vsyncpa [#allocation6], 0
    // Predicated region
    $region2: #{tpu_custom_call.1} parent=1 // pred_check
      _
    $region3: #{tpu_custom_call.1} parent=1 // pred_check_branch
      %13 = sbr.rel (0) target = $region5
    $region4: #{tpu_custom_call.1} parent=1 // pred_region
      _
    $region5: #{tpu_custom_call.1} parent=1 // pred_fallthru
      _
    // Predicated region
    $region6: #{tpu_custom_call.1} parent=1 // pred_check
      _
    $region7: #{tpu_custom_call.1} parent=1 // pred_check_branch
      %15 = sbr.rel (0) target = $region9
    $region8: #{tpu_custom_call.1} parent=1 // pred_region
      _
    $region9: #{tpu_custom_call.1} parent=1 // pred_fallthru
      _
    // Predicated region
    $region10: #{tpu_custom_call.1} parent=1 // pred_check
      _
    $region11: #{tpu_custom_call.1} parent=1 // pred_check_branch
      %17 = sbr.rel (0) target = $region13
    $region12: #{tpu_custom_call.1} parent=1 // pred_region
      %s19 = ssub.s32 128, 128
      %20 = vsyncadd [#allocation5], %s19
      %s22 = sshll.u32 [#allocation4], 4
      %s23 = int_to_ptr.vmem [resolvable:$true] %s22
      %25 = dma.hbm_to_vmem [thread:$0]  %s2, 128, %s23, [#allocation5]
    $region13: #{tpu_custom_call.1} parent=1 // pred_fallthru
      _
    // Predicated region
    $region14: #{tpu_custom_call.1} parent=1 // pred_check
      _
    $region15: #{tpu_custom_call.1} parent=1 // pred_check_branch
      %27 = sbr.rel (0) target = $region17
    $region16: #{tpu_custom_call.1} parent=1 // pred_region
      %28 = dma.done [#allocation5], 128
    $region17: #{tpu_custom_call.1} parent=1 // pred_fallthru
      _
    %s29 = sld [smem:[#allocation2]]
    %s30 = sld [smem:[#allocation3]]
    %v31 = vld [vmem:[#allocation4] sm:$0xff]
    %v32 = vstv %s29
    %v33 = vmul.f32 %v31, %v32
    %v34 = vstv %s30
    %v35 = vadd.f32 %v33, %v34
    %36 = vst [vmem:[#allocation7] sm:$0xff] %v35
    // Predicated region
    $region18: #{tpu_custom_call.1} parent=1 // pred_check
      _
    $region19: #{tpu_custom_call.1} parent=1 // pred_check_branch
      %38 = sbr.rel (0) target = $region21
    $region20: #{tpu_custom_call.1} parent=1 // pred_region
      %s40 = ssub.s32 128, 128
      %41 = vsyncadd [#allocation6], %s40
      %s43 = sshll.u32 [#allocation7], 4
      %s44 = int_to_ptr.vmem [resolvable:$true] %s43
      %46 = dma.vmem_to_hbm [thread:$0]  %s44, 128, %s3, [#allocation6]
    $region21: #{tpu_custom_call.1} parent=1 // pred_fallthru
      _
    // Predicated region
    $region22: #{tpu_custom_call.1} parent=1 // pred_check
      _
    $region23: #{tpu_custom_call.1} parent=1 // pred_check_branch
      %48 = sbr.rel (0) target = $region25
    $region24: #{tpu_custom_call.1} parent=1 // pred_region
      %49 = dma.done [#allocation6], 128
    $region25: #{tpu_custom_call.1} parent=1 // pred_fallthru
      _
    %50 = vsyncpa [#allocation5], 1
    %51 = vsyncpa [#allocation6], 1

</llo_original>
